<compile_context>
chip_gen: v7x
topology: tpu7x:2x2x1
jax: 0.10.0
libtpu: 0.0.40
codegen_flags: <defaults>
</compile_context>

<pallas_src>
import jax
import jax.numpy as jnp
from jax.experimental import pallas as pl
from jax.experimental.pallas import tpu as pltpu


def _spatial_dropout_kernel(x_ref, noise_ref, o_ref):
    # x_ref: (bb, tt, E); noise_ref: (bb, 1, E) -> broadcasts across the T axis.
    o_ref[...] = (x_ref[...] * noise_ref[...]).astype(o_ref.dtype)


def _vmem_capacity_bytes():
    try:
        return int(pltpu.get_tpu_info().vmem_capacity_bytes)
    except Exception:
        return 64 * 1024 * 1024  # conservative fallback (v7x-sized)


def _tile_sizes(B, T, E, itemsize, target_tile_bytes):
    """Pick (bb, tt): batch rows / time steps per block."""
    # Sublane quantum for the second-to-last dim: 8 (f32), 16 (bf16), 32 (i8).
    sub = max(8, 32 // max(1, itemsize))
    t_row_bytes = E * itemsize          # one (1, 1, E) slab
    full_row_bytes = T * t_row_bytes    # one (1, T, E) row

    if full_row_bytes <= target_tile_bytes:
        tt = T
        bb = max(1, min(B, target_tile_bytes // max(1, full_row_bytes)))
    else:
        bb = 1
        if T <= sub:
            tt = T
        else:
            tt = (target_tile_bytes // max(1, t_row_bytes)) // sub * sub
            tt = int(min(max(tt, sub), T))

    # Keep the grid >= ~4 steps so the DMA pipeline (and megacore on the
    # parallel batch axis) has something to overlap; shrink bb if needed.
    while bb > 1 and pl.cdiv(B, bb) * pl.cdiv(T, tt) < 4:
        bb = max(1, bb // 2)
    return bb, tt


def spatial_dropout(x, *, drop=0.5, key=None, training=True, donate=False):
    """Pallas SpatialDropout matching the PyTorch module's forward().

    x: (B, T, E) float array. Noise shape is (B, 1, E) (the module default).
    """
    if (not training) or drop == 0.0:
        return x
    if drop == 1.0:
        return jnp.zeros_like(x)
    if key is None:
        key = jax.random.PRNGKey(0)

    B, T, E = x.shape
    itemsize = jnp.dtype(x.dtype).itemsize
    keep_prob = 1.0 - drop

    # One Bernoulli(keep)/keep value per (batch, channel), like torch's
    # bernoulli_(1-drop).div_(1-drop) on a (B,1,E) buffer.
    keep = jax.random.uniform(key, (B, 1, E), dtype=jnp.float32) < keep_prob
    noise = jnp.where(
        keep,
        jnp.asarray(1.0 / keep_prob, dtype=x.dtype),
        jnp.asarray(0.0, dtype=x.dtype),
    )

    # Per-generation tile budget: ~1/8 of VMEM capacity, capped at 12 MiB
    # (v7x 64 MiB -> 8 MiB tiles; v5e/v6e 128 MiB -> 12 MiB tiles).
    vmem_cap = _vmem_capacity_bytes()
    target_tile_bytes = int(max(1 << 20, min(12 << 20, vmem_cap // 8)))
    bb, tt = _tile_sizes(B, T, E, itemsize, target_tile_bytes)

    nb = pl.cdiv(B, bb)
    nt = pl.cdiv(T, tt)
    grid = (nb, nt)

    # 2x input + 2x output buffers of the tile, plus the resident noise block
    # and headroom, clamped below the physical capacity.
    tile_bytes = bb * tt * E * itemsize
    noise_bytes = bb * E * itemsize
    vmem_limit = 4 * tile_bytes + 2 * noise_bytes + (4 << 20)
    vmem_limit = int(min(max(vmem_limit, 16 << 20), vmem_cap - (8 << 20)))

    cost = pl.CostEstimate(
        flops=x.size,
        transcendentals=0,
        bytes_accessed=2 * x.size * itemsize + noise.size * itemsize,
    )

    return pl.pallas_call(
        _spatial_dropout_kernel,
        out_shape=jax.ShapeDtypeStruct((B, T, E), x.dtype),
        grid_spec=pltpu.PrefetchScalarGridSpec(
            num_scalar_prefetch=0,
            grid=grid,
            in_specs=[
                pl.BlockSpec((bb, tt, E), lambda i, j: (i, j, 0)),
                # T-invariant index_map: the noise block stays resident across
                # the inner time loop (no per-step tiny DMA).
                pl.BlockSpec((bb, 1, E), lambda i, j: (i, 0, 0)),
            ],
            out_specs=pl.BlockSpec((bb, tt, E), lambda i, j: (i, j, 0)),
        ),
        compiler_params=pltpu.CompilerParams(
            # Batch tiles are independent (megacore-shardable); keep the time
            # axis "arbitrary" so the resident-noise revisit pattern is kept.
            dimension_semantics=("parallel", "arbitrary"),
            vmem_limit_bytes=vmem_limit,
        ),
        cost_estimate=cost,
        input_output_aliases=({0: 0} if donate else {}),
    )(x, noise)


if __name__ == "__main__":
    B, T, E = 8, 8, 128
    key = jax.random.PRNGKey(0)
    xkey, nkey = jax.random.split(key)
    x = jax.random.normal(xkey, (B, T, E), dtype=jnp.float32)

    drop = 0.5
    y = spatial_dropout(x, drop=drop, key=nkey, training=True)
    y = jax.block_until_ready(y)

    # Sanity checks on SpatialDropout semantics:
    assert y.shape == x.shape and y.dtype == x.dtype
    # Each output element is either 0 or x / (1 - drop).
    scaled = x / (1.0 - drop)
    ok_elem = jnp.logical_or(
        jnp.isclose(y, 0.0, atol=1e-6), jnp.isclose(y, scaled, atol=1e-5)
    )
    assert bool(jnp.all(ok_elem))
    # Noise is broadcast across the time axis: zero-pattern identical for all t.
    zero_mask = (y == 0.0)
    assert bool(jnp.all(zero_mask == zero_mask[:, :1, :]))
    # Eval mode is identity.
    y_eval = jax.block_until_ready(spatial_dropout(x, drop=drop, training=False))
    assert bool(jnp.all(y_eval == x))
    # drop=1.0 zeroes everything.
    y_all = jax.block_until_ready(spatial_dropout(x, drop=1.0, key=nkey, training=True))
    assert bool(jnp.all(y_all == 0.0))

    print("KERNEL_OK")
</pallas_src>

<mosaic_0001>
module attributes {stable_mosaic.version = 11 : i64} {
  func.func @_spatial_dropout_kernel(%arg0: i32, %arg1: i32, %arg2: memref<2x8x128xf32, #tpu.memory_space<vmem>>, %arg3: memref<2x1x128xf32, #tpu.memory_space<vmem>>, %arg4: memref<2x8x128xf32, #tpu.memory_space<vmem>>) attributes {dimension_semantics = [#tpu.dimension_semantics<parallel>, #tpu.dimension_semantics<arbitrary>], iteration_bounds = array<i64: 4, 1>, scalar_prefetch = 0 : i64, scratch_operands = 0 : i64, tpu.core_type = #tpu.core_type<tc>, window_params = [{transform_indices = @transform_0, window_bounds = array<i64: 2, 8, 128>}, {transform_indices = @transform_1, window_bounds = array<i64: 2, 1, 128>}, {transform_indices = @transform_2, window_bounds = array<i64: 2, 8, 128>}]} {
    %c0 = arith.constant 0 : index
    %c0_0 = arith.constant 0 : index
    %c0_1 = arith.constant 0 : index
    %0 = vector.load %arg2[%c0, %c0_0, %c0_1] : memref<2x8x128xf32, #tpu.memory_space<vmem>>, vector<2x8x128xf32>
    %c0_2 = arith.constant 0 : index
    %c0_3 = arith.constant 0 : index
    %c0_4 = arith.constant 0 : index
    %1 = vector.load %arg3[%c0_2, %c0_3, %c0_4] : memref<2x1x128xf32, #tpu.memory_space<vmem>>, vector<2x1x128xf32>
    %2 = vector.broadcast %1 : vector<2x1x128xf32> to vector<2x8x128xf32>
    %3 = arith.mulf %0, %2 : vector<2x8x128xf32>
    %c0_5 = arith.constant 0 : index
    %c0_6 = arith.constant 0 : index
    %c0_7 = arith.constant 0 : index
    %4 = vector.load %arg4[%c0_5, %c0_6, %c0_7] : memref<2x8x128xf32, #tpu.memory_space<vmem>>, vector<2x8x128xf32>
    tpu.vector_store %arg4[%c0_5, %c0_6, %c0_7], %3 {strides = array<i32>} : memref<2x8x128xf32, #tpu.memory_space<vmem>>, vector<2x8x128xf32>,
    return
  }
  func.func @transform_0(%arg0: i32, %arg1: i32) -> (i32, i32, i32) {
    %c0_i32 = arith.constant 0 : i32
    %c0_i32_0 = arith.constant 0 : i32
    return %arg0, %arg1, %c0_i32 : i32, i32, i32
  }
  func.func @transform_1(%arg0: i32, %arg1: i32) -> (i32, i32, i32) {
    %c0_i32 = arith.constant 0 : i32
    %c0_i32_0 = arith.constant 0 : i32
    %c0_i32_1 = arith.constant 0 : i32
    return %arg0, %c0_i32, %c0_i32_0 : i32, i32, i32
  }
  func.func @transform_2(%arg0: i32, %arg1: i32) -> (i32, i32, i32) {
    %c0_i32 = arith.constant 0 : i32
    %c0_i32_0 = arith.constant 0 : i32
    return %arg0, %arg1, %c0_i32 : i32, i32, i32
  }
}

</mosaic_0001>

<llo_original>
// kernel: tpu_custom_call.1
$region0: #{tpu_custom_call.1}
  #allocation0 [shape = 'u32[]', space=smem, size = 0x4, offset = 0x4, fixed_abs, tag = 'smem constant byte address 0x4 - core index']
  #allocation1 [shape = 'u32[144,128]{1,0:T(1,128)}', space=vmem, size = 0x12000, scoped, tag = 'internal scratch']
  %s0 = inlined_call_operand.hbm [shape: f32[8,8,128], index: 0, kind: input, shape index: {}]
  %s1 = inlined_call_operand.hbm [shape: f32[8,1,128], index: 1, kind: input, shape index: {}]
  %s2 = inlined_call_operand.hbm [shape: f32[8,8,128], index: 2, kind: output, shape index: {}]
  %s3 = sld [smem:[#allocation0]]
  $region49: #{tpu_custom_call.1} parent=0
    _
  %s5 = ssub.s32 1, %s3
  %s6 = scalar_select 0, %s5, %s3
  $region1: #{tpu_custom_call.1} parent=0
    #allocation2 [shape = 'u8[16384]{0}', space=vmem, size = 0x4000, scoped, tag = 'input window, operand 0']
    #allocation3 [shape = 's32[2]{0}', space=sflag, size = 0x8, scoped, tag = 'scoped memory for tpu_custom_call.1']
    #allocation4 [shape = 's32[2]{0}', space=sflag, size = 0x8, scoped, tag = 'scoped memory for tpu_custom_call.1']
    #allocation5 [shape = 'u8[2048]{0}', space=vmem, size = 0x800, scoped, tag = 'input window, operand 1']
    #allocation6 [shape = 's32[2]{0}', space=sflag, size = 0x8, scoped, tag = 'scoped memory for tpu_custom_call.1']
    #allocation7 [shape = 'u8[16384]{0}', space=vmem, size = 0x4000, scoped, tag = 'output window, operand 0']
    %7 = vsyncpa [#allocation3], 0
    %s8 = scalar_lea.sflag [#allocation3], 1
    %9 = vsyncpa %s8, 0
    %10 = vsyncpa [#allocation6], 0
    %s11 = scalar_lea.sflag [#allocation6], 1
    %12 = vsyncpa %s11, 0
    %13 = vsyncpa [#allocation4], 0
    %s14 = scalar_lea.sflag [#allocation4], 1
    %15 = vsyncpa %s14, 0
    loop: start=0, step=1, limit=6
    $region2: #{tpu_custom_call.1} parent=1 // loop_pre_header
      _
    $region3: #{tpu_custom_call.1} parent=1 // loop_header
      %s17 = sphi 0, %s21
      %p18 = scmp.ge.s32.totalorder %s17, 6
      %s24 = sphi 0, %s36
      %s25 = sphi 0, %s32
      %s26 = sphi 0, %s24
      %s27 = sphi 0, %s25
      %s28 = sphi 0, %s26
      %s29 = sphi 0, %s27
      %s41 = sphi 0, %s43
      %s44 = sphi 0, %s41
      %s45 = sphi 0, %s44
      %s61 = sphi 0, %s45
      %s67 = sphi 0, %s69
      %s70 = sphi 0, %s67
      %s71 = sphi 0, %s70
      %s87 = sphi 0, %s71
      %s95 = sphi 0, %s97
      %s98 = sphi 0, %s95
      %s99 = sphi 0, %s98
      %s115 = sphi 0, %s99
    $region4: #{tpu_custom_call.1} parent=1 // loop_header_branch
      %20 = sbr.rel (%p18) target = $region8
    $region5: #{tpu_custom_call.1} parent=1 // loop_body
      %s22 = ssub.s32 %s17, 1
      %s23 = ssub.s32 %s17, 2
      %s30 = sadd.s32 1, %s25
      %p31 = scmp.ge.s32.totalorder %s30, 1
      %s32 = scalar_select %p31, 0, %s30
      %s33 = sadd.s32 1, %s24
      %s34 = scalar_select %p31, %s33, %s24
      %p35 = scmp.ge.s32.totalorder %s34, 4
      %s36 = scalar_select %p35, 0, %s34
      %s37 = ssub.s32 %s24, %s36
      %s38 = ssub.s32 %s25, %s32
      %s39 = sor.u32 %s37, %s38
      %p40 = scmp.eq.s32.totalorder %s39, 0
      %s42 = sadd.s32 %s41, 1
      %s43 = scalar_select %p40, %s41, %s42
      %p46 = pneg %p40
      %p47 = scmp.eq.s32.totalorder %s17, 3
      %p48 = por %p46, %p47
      %p49 = scmp.ne.s32.totalorder %s41, %s44
      %p50 = scmp.eq.s32.totalorder %s17, 0
      %p51 = por %p49, %p50
      %p52 = scmp.ne.s32.totalorder %s41, %s44
      %p53 = scmp.eq.s32.totalorder %s22, 3
      %p54 = por %p52, %p53
      %p55 = scmp.ne.s32.totalorder %s44, %s45
      %p56 = scmp.eq.s32.totalorder %s22, 0
      %p57 = por %p55, %p56
      %p58 = scmp.ne.s32.totalorder %s44, %s45
      %p59 = scmp.eq.s32.totalorder %s23, 3
      %p60 = por %p58, %p59
      %p62 = scmp.ne.s32.totalorder %s45, %s61
      %p63 = scmp.eq.s32.totalorder %s23, 0
      %p64 = por %p62, %p63
      %s65 = ssub.s32 %s24, %s36
      %p66 = scmp.eq.s32.totalorder %s65, 0
      %s68 = sadd.s32 %s67, 1
      %s69 = scalar_select %p66, %s67, %s68
      %p72 = pneg %p66
      %p73 = scmp.eq.s32.totalorder %s17, 3
      %p74 = por %p72, %p73
      %p75 = scmp.ne.s32.totalorder %s67, %s70
      %p76 = scmp.eq.s32.totalorder %s17, 0
      %p77 = por %p75, %p76
      %p78 = scmp.ne.s32.totalorder %s67, %s70
      %p79 = scmp.eq.s32.totalorder %s22, 3
      %p80 = por %p78, %p79
      %p81 = scmp.ne.s32.totalorder %s70, %s71
      %p82 = scmp.eq.s32.totalorder %s22, 0
      %p83 = por %p81, %p82
      %p84 = scmp.ne.s32.totalorder %s70, %s71
      %p85 = scmp.eq.s32.totalorder %s23, 3
      %p86 = por %p84, %p85
      %p88 = scmp.ne.s32.totalorder %s71, %s87
      %p89 = scmp.eq.s32.totalorder %s23, 0
      %p90 = por %p88, %p89
      %s91 = ssub.s32 %s24, %s36
      %s92 = ssub.s32 %s25, %s32
      %s93 = sor.u32 %s91, %s92
      %p94 = scmp.eq.s32.totalorder %s93, 0
      %s96 = sadd.s32 %s95, 1
      %s97 = scalar_select %p94, %s95, %s96
      %p100 = pneg %p94
      %p101 = scmp.eq.s32.totalorder %s17, 3
      %p102 = por %p100, %p101
      %p103 = scmp.ne.s32.totalorder %s95, %s98
      %p104 = scmp.eq.s32.totalorder %s17, 0
      %p105 = por %p103, %p104
      %p106 = scmp.ne.s32.totalorder %s95, %s98
      %p107 = scmp.eq.s32.totalorder %s22, 3
      %p108 = por %p106, %p107
      %p109 = scmp.ne.s32.totalorder %s98, %s99
      %p110 = scmp.eq.s32.totalorder %s22, 0
      %p111 = por %p109, %p110
      %p112 = scmp.ne.s32.totalorder %s98, %s99
      %p113 = scmp.eq.s32.totalorder %s23, 3
      %p114 = por %p112, %p113
      %p116 = scmp.ne.s32.totalorder %s99, %s115
      %p117 = scmp.eq.s32.totalorder %s23, 0
      %p118 = por %p116, %p117
      %p119 = scmp.le.s32.totalorder 1, %s17
      %p120 = scmp.lt.s32.totalorder %s17, 5
      %p121 = pnand %p119, %p120
      %p122 = pneg %p121
      // Predicated region
      $region9: #{tpu_custom_call.1} parent=5 // pred_check
        _
      $region10: #{tpu_custom_call.1} parent=5 // pred_check_branch
        %124 = sbr.rel (%p121) target = $region12
      $region11: #{tpu_custom_call.1} parent=5 // pred_region
        %s125 = ssub.s32 %s17, 1
      $region12: #{tpu_custom_call.1} parent=5 // pred_fallthru
        _
      %p126 = scmp.lt.s32.totalorder %s17, 4
      // Predicated region
      $region13: #{tpu_custom_call.1} parent=5 // pred_check
        %p127 = pneg %p126
      $region14: #{tpu_custom_call.1} parent=5 // pred_check_branch
        %129 = sbr.rel (%p127) target = $region16
      $region15: #{tpu_custom_call.1} parent=5 // pred_region
        // Predicated region
        $region17: #{tpu_custom_call.1} parent=15 // pred_check
          %p130 = pneg %p51
        $region18: #{tpu_custom_call.1} parent=15 // pred_check_branch
          %132 = sbr.rel (%p130) target = $region20
        $region19: #{tpu_custom_call.1} parent=15 // pred_region
          %s133 = sand.u32 %s41, 1
          %s134 = scalar_lea.sflag [#allocation3], %s133
          %s135 = sand.u32 %s41, 1
          %s136 = smul.addr %s135, 16
          %s137 = scalar_lea.vmem [#allocation2], %s136
          %s138 = smul.u32 2, %s24
          %s140 = ssub.s32 256, 256
          %141 = vsyncadd %s134, %s140
          %s142 = sadd.s32 %s25, %s138
          %s143 = smul.addr %s142, 128
          %s144 = scalar_lea.hbm %s0, %s143
          %s145 = sshll.u32 %s137, 4
          %s146 = int_to_ptr.vmem [resolvable:$true] %s145
          %151 = dma.hbm_to_vmem [thread:$0]  %s144, 256, %s146, %s134, 128, 128, 8
        $region20: #{tpu_custom_call.1} parent=15 // pred_fallthru
          _
        // Predicated region
        $region21: #{tpu_custom_call.1} parent=15 // pred_check
          %p152 = pneg %p77
        $region22: #{tpu_custom_call.1} parent=15 // pred_check_branch
          %154 = sbr.rel (%p152) target = $region24
        $region23: #{tpu_custom_call.1} parent=15 // pred_region
          %s155 = sand.u32 %s67, 1
          %s156 = scalar_lea.sflag [#allocation6], %s155
          %s157 = sand.u32 %s67, 1
          %s158 = smul.addr %s157, 2
          %s159 = scalar_lea.vmem [#allocation5], %s158
          %s160 = smul.u32 2, %s24
          %s162 = ssub.s32 32, 32
          %163 = vsyncadd %s156, %s162
          %s164 = smul.addr %s160, 16
          %s165 = scalar_lea.hbm %s1, %s164
          %s166 = sshll.u32 %s159, 4
          %s167 = int_to_ptr.vmem [resolvable:$true] %s166
          %172 = dma.hbm_to_vmem [thread:$0]  %s165, 32, %s167, %s156, 16, 16, 1
        $region24: #{tpu_custom_call.1} parent=15 // pred_fallthru
          _
      $region16: #{tpu_custom_call.1} parent=5 // pred_fallthru
        _
      %p173 = scmp.le.s32.totalorder 1, %s17
      %p174 = scmp.lt.s32.totalorder %s17, 5
      %p175 = pnand %p173, %p174
      %p176 = pneg %p175
      // Predicated region
      $region25: #{tpu_custom_call.1} parent=5 // pred_check
        _
      $region26: #{tpu_custom_call.1} parent=5 // pred_check_branch
        %178 = sbr.rel (%p175) target = $region28
      $region27: #{tpu_custom_call.1} parent=5 // pred_region
        %s179 = ssub.s32 %s17, 1
        %s180 = sand.u32 %s44, 1
        %s181 = scalar_lea.sflag [#allocation3], %s180
        %s182 = sand.u32 %s44, 1
        %s183 = smul.addr %s182, 16
        %s184 = scalar_lea.vmem [#allocation2], %s183
        // Predicated region
        $region29: #{tpu_custom_call.1} parent=27 // pred_check
          %p185 = pneg %p57
        $region30: #{tpu_custom_call.1} parent=27 // pred_check_branch
          %187 = sbr.rel (%p185) target = $region32
        $region31: #{tpu_custom_call.1} parent=27 // pred_region
          %188 = dma.done %s181, 256
        $region32: #{tpu_custom_call.1} parent=27 // pred_fallthru
          _
        %s189 = sand.u32 %s70, 1
        %s190 = scalar_lea.sflag [#allocation6], %s189
        %s191 = sand.u32 %s70, 1
        %s192 = smul.addr %s191, 2
        %s193 = scalar_lea.vmem [#allocation5], %s192
        // Predicated region
        $region33: #{tpu_custom_call.1} parent=27 // pred_check
          %p194 = pneg %p83
        $region34: #{tpu_custom_call.1} parent=27 // pred_check_branch
          %196 = sbr.rel (%p194) target = $region36
        $region35: #{tpu_custom_call.1} parent=27 // pred_region
          %197 = dma.done %s190, 32
        $region36: #{tpu_custom_call.1} parent=27 // pred_fallthru
          _
        %s198 = sand.u32 %s44, 1
        %s199 = scalar_lea.sflag [#allocation3], %s198
        %s200 = sand.u32 %s44, 1
        %s201 = smul.addr %s200, 16
        %s202 = scalar_lea.vmem [#allocation2], %s201
        %p203 = pneg %p57
        %p204 = pneg %p54
        %s205 = sand.u32 %s70, 1
        %s206 = scalar_lea.sflag [#allocation6], %s205
        %s207 = sand.u32 %s70, 1
        %s208 = smul.addr %s207, 2
        %s209 = scalar_lea.vmem [#allocation5], %s208
        %p210 = pneg %p83
        %p211 = pneg %p80
        %p212 = pneg %p111
        %p213 = pneg %p108
        %s214 = sand.u32 %s98, 1
        %s215 = scalar_lea.sflag [#allocation4], %s214
        %s216 = sand.u32 %s98, 1
        %s217 = smul.addr %s216, 16
        %s218 = scalar_lea.vmem [#allocation7], %s217
        %s219 = smul.u32 2, %s26
        %s220 = smul.u32 2, %s26
        %s221 = smul.u32 2, %s26
        %v222 = vld [vmem:[%s184] sm:$0xff]
        %v223 = vld [vmem:[%s184 + $0x8] sm:$0xff]
        %v224 = vld [vmem:[%s193] sm:$0x1]
        %v225 = vld [vmem:[%s193 + $0x1] sm:$0x1]
        %v228 = vlaneseq
        %v229 = vshrl.u32 %v228, 7
        %v230 = vsub.s32 0, %v229
        %v231 = vrot.slane %v224, %v230
        %v232 = vlaneseq
        %v233 = vshrl.u32 %v232, 7
        %v234 = vsub.s32 0, %v233
        %v235 = vrot.slane %v225, %v234
        %v238 = vmul.f32 %v222, %v231
        %v239 = vmul.f32 %v223, %v235
        %240 = vst [vmem:[%s218] sm:$0xff] %v238
        %241 = vst [vmem:[%s218 + $0x8] sm:$0xff] %v239
        %s242 = sand.u32 %s98, 1
        %s243 = scalar_lea.sflag [#allocation4], %s242
        %s244 = sand.u32 %s98, 1
        %s245 = smul.addr %s244, 16
        %s246 = scalar_lea.vmem [#allocation7], %s245
        // Predicated region
        $region37: #{tpu_custom_call.1} parent=27 // pred_check
          %p247 = pneg %p108
        $region38: #{tpu_custom_call.1} parent=27 // pred_check_branch
          %249 = sbr.rel (%p247) target = $region40
        $region39: #{tpu_custom_call.1} parent=27 // pred_region
          %s250 = smul.u32 2, %s26
          %s252 = ssub.s32 256, 256
          %253 = vsyncadd %s243, %s252
          %s254 = sadd.s32 %s27, %s250
          %s255 = smul.addr %s254, 128
          %s256 = scalar_lea.hbm %s2, %s255
          %s257 = sshll.u32 %s246, 4
          %s258 = int_to_ptr.vmem [resolvable:$true] %s257
          %263 = dma.vmem_to_hbm [thread:$0]  %s258, 256, %s256, %s243, 128, 128, 8
        $region40: #{tpu_custom_call.1} parent=27 // pred_fallthru
          _
      $region28: #{tpu_custom_call.1} parent=5 // pred_fallthru
        _
      %p264 = scmp.le.s32.totalorder 2, %s17
      // Predicated region
      $region41: #{tpu_custom_call.1} parent=5 // pred_check
        %p265 = pneg %p264
      $region42: #{tpu_custom_call.1} parent=5 // pred_check_branch
        %267 = sbr.rel (%p265) target = $region44
      $region43: #{tpu_custom_call.1} parent=5 // pred_region
        %s268 = ssub.s32 %s17, 2
        // Predicated region
        $region45: #{tpu_custom_call.1} parent=43 // pred_check
          %p269 = pneg %p114
        $region46: #{tpu_custom_call.1} parent=43 // pred_check_branch
          %271 = sbr.rel (%p269) target = $region48
        $region47: #{tpu_custom_call.1} parent=43 // pred_region
          %s272 = sand.u32 %s99, 1
          %s273 = scalar_lea.sflag [#allocation4], %s272
          %s274 = sand.u32 %s99, 1
          %s275 = smul.addr %s274, 16
          %s276 = scalar_lea.vmem [#allocation7], %s275
          %277 = dma.done %s273, 256
        $region48: #{tpu_custom_call.1} parent=43 // pred_fallthru
          _
      $region44: #{tpu_custom_call.1} parent=5 // pred_fallthru
        _
    $region6: #{tpu_custom_call.1} parent=1 // loop_footer
      %s21 = sadd.s32 1, %s17
    $region7: #{tpu_custom_call.1} parent=1 // loop_footer_branch
      %16 = sbr.rel target = $region3
    $region8: #{tpu_custom_call.1} parent=1 // loop_exit
      _
    %278 = vsyncpa [#allocation3], 1
    %s279 = scalar_lea.sflag [#allocation3], 1
    %280 = vsyncpa %s279, 1
    %281 = vsyncpa [#allocation6], 1
    %s282 = scalar_lea.sflag [#allocation6], 1
    %283 = vsyncpa %s282, 1
    %284 = vsyncpa [#allocation4], 1
    %s285 = scalar_lea.sflag [#allocation4], 1
    %286 = vsyncpa %s285, 1

</llo_original>
